<compile_context>
chip_gen: v6e
topology: v6e:2x2x1
jax: 0.10.0
libtpu: 0.0.40
codegen_flags: <defaults>
</compile_context>

<pallas_src>
import functools

import jax
import jax.numpy as jnp
from jax.experimental import pallas as pl
from jax.experimental.pallas import tpu as pltpu

_COLS = 512            # lane-dense slab width (multiple of 128)
_MAX_TILE_ROWS = 1024  # 1024 x 512 x f32 = 2 MiB per block
_TWO_PI = 6.283185307179586


def _mix32(x):
    """lowbias32 integer hash (uint32 -> uint32); pure VPU ops."""
    x = x ^ (x >> jnp.uint32(16))
    x = x * jnp.uint32(0x7FEB352D)
    x = x ^ (x >> jnp.uint32(15))
    x = x * jnp.uint32(0x846CA68B)
    x = x ^ (x >> jnp.uint32(16))
    return x


def _bits_to_uniform(bits_u32):
    """uint32 bits -> float32 uniform in [0, 1) with 24-bit resolution."""
    return (bits_u32 >> jnp.uint32(8)).astype(jnp.int32).astype(jnp.float32) * jnp.float32(
        1.0 / 16777216.0
    )


def _gaussian_noise_kernel(seed_ref, x_ref, o_ref, *, stddev):
    tile_rows, cols = x_ref.shape
    half_cols = cols // 2
    half_shape = (tile_rows, half_cols)

    # Distinct counter per (u1, u2) pair, unique across the whole grid.
    row = jax.lax.broadcasted_iota(jnp.int32, half_shape, 0)
    col = jax.lax.broadcasted_iota(jnp.int32, half_shape, 1)
    base = pl.program_id(0) * (tile_rows * half_cols)
    ctr = (base + row * half_cols + col).astype(jnp.uint32)

    # Fold the user seed in via a golden-ratio multiply, then hash.
    seed = seed_ref[0].astype(jnp.uint32) * jnp.uint32(0x9E3779B9)
    bits1 = _mix32(ctr ^ seed)
    bits2 = _mix32(bits1 + jnp.uint32(0x68BC21EB))

    u1 = _bits_to_uniform(bits1)  # [0, 1)
    u2 = _bits_to_uniform(bits2)  # [0, 1)

    # Box-Muller, using BOTH branches: 2 Gaussians per (u1, u2) pair.
    # log(1 - u1) is finite since (1 - u1) is in (0, 1].
    r = jnp.sqrt(jnp.float32(-2.0) * jnp.log(jnp.float32(1.0) - u1))
    theta = jnp.float32(_TWO_PI) * u2
    z = jnp.concatenate([r * jnp.cos(theta), r * jnp.sin(theta)], axis=-1)

    # Compute in f32, store back in the input/output dtype.
    xv = x_ref[...].astype(jnp.float32)
    o_ref[...] = (xv + jnp.float32(stddev) * z).astype(o_ref.dtype)


def gaussian_noise(x, stddev, *, seed=0, training=True):
    """Pallas equivalent of GaussianNoise.forward (any shape, native dtype)."""
    if not training or stddev == 0.0:
        return x

    orig_shape = x.shape
    total = int(x.size)

    rows = pl.cdiv(total, _COLS)
    if rows <= _MAX_TILE_ROWS:
        # Single block equal to the full (possibly unaligned) array: always legal.
        tile_rows = rows
        rows_padded = rows
    else:
        tile_rows = _MAX_TILE_ROWS
        rows_padded = ((rows + tile_rows - 1) // tile_rows) * tile_rows
    padded_total = rows_padded * _COLS

    x_flat = x.reshape(-1)
    if padded_total != total:
        x_flat = jnp.pad(x_flat, (0, padded_total - total))
    x2d = x_flat.reshape(rows_padded, _COLS)

    seed_arr = jnp.array([seed], dtype=jnp.int32)

    out2d = pl.pallas_call(
        functools.partial(_gaussian_noise_kernel, stddev=float(stddev)),
        out_shape=jax.ShapeDtypeStruct((rows_padded, _COLS), x.dtype),
        grid_spec=pltpu.PrefetchScalarGridSpec(
            num_scalar_prefetch=1,
            grid=(rows_padded // tile_rows,),
            in_specs=[pl.BlockSpec((tile_rows, _COLS), lambda i, seed_ref: (i, 0))],
            out_specs=pl.BlockSpec((tile_rows, _COLS), lambda i, seed_ref: (i, 0)),
        ),
        compiler_params=pltpu.CompilerParams(
            dimension_semantics=("parallel",)),
    )(seed_arr, x2d)

    out_flat = out2d.reshape(-1)
    if padded_total != total:
        out_flat = out_flat[:total]
    return out_flat.reshape(orig_shape)


if __name__ == "__main__":
    key = jax.random.PRNGKey(0)
    # Small NCHW input consistent with a conv-style pipeline: [B, C, H, W].
    x = jax.random.normal(key, (2, 4, 16, 16), dtype=jnp.float32)
    stddev = 0.1

    # Training mode: noisy output.
    y_train = jax.block_until_ready(gaussian_noise(x, stddev, seed=0, training=True))

    # Eval mode: identity (matches PyTorch semantics when not self.training).
    y_eval = jax.block_until_ready(gaussian_noise(x, stddev, seed=0, training=False))

    assert y_train.shape == x.shape and y_train.dtype == x.dtype
    assert jnp.allclose(y_eval, x)

    diff = y_train - x
    assert float(jnp.max(jnp.abs(diff))) > 0.0
    s = float(jnp.std(diff))
    m = float(jnp.mean(diff))
    assert 0.05 < s < 0.2, f"noise std {s} not ~0.1"
    assert abs(m) < 0.05, f"noise mean {m} not ~0"

    print("KERNEL_OK")
</pallas_src>

<mosaic_0001>
module attributes {stable_mosaic.version = 11 : i64} {
  func.func @_gaussian_noise_kernel(%arg0: i32, %arg1: memref<1xi32, #tpu.memory_space<smem>>, %arg2: memref<4x512xf32, #tpu.memory_space<vmem>>, %arg3: memref<4x512xf32, #tpu.memory_space<vmem>>) attributes {dimension_semantics = [#tpu.dimension_semantics<parallel>], iteration_bounds = array<i64: 1>, scalar_prefetch = 1 : i64, scratch_operands = 0 : i64, tpu.core_type = #tpu.core_type<tc>, window_params = [{transform_indices = @transform_0, window_bounds = array<i64: 4, 512>}, {transform_indices = @transform_1, window_bounds = array<i64: 4, 512>}]} {
    %0 = tpu.iota {dimensions = array<i32: 0>} : vector<4x256xi32>
    %1 = tpu.iota {dimensions = array<i32: 1>} : vector<4x256xi32>
    %c1024_i32 = arith.constant 1024 : i32
    %2 = arith.muli %arg0, %c1024_i32 : i32
    %c256_i32 = arith.constant 256 : i32
    %3 = vector.broadcast %c256_i32 : i32 to vector<4x256xi32>
    %4 = arith.muli %0, %3 : vector<4x256xi32>
    %5 = vector.broadcast %2 : i32 to vector<4x256xi32>
    %6 = arith.addi %5, %4 : vector<4x256xi32>
    %7 = arith.addi %6, %1 : vector<4x256xi32>
    %c0 = arith.constant 0 : index
    %8 = memref.load %arg1[%c0] : memref<1xi32, #tpu.memory_space<smem>>
    %c-1640531527_i32 = arith.constant -1640531527 : i32
    %9 = arith.muli %8, %c-1640531527_i32 : i32
    %10 = vector.broadcast %9 : i32 to vector<4x256xi32>
    %11 = arith.xori %7, %10 : vector<4x256xi32>
    %c16_i32 = arith.constant 16 : i32
    %12 = vector.broadcast %c16_i32 : i32 to vector<4x256xi32>
    %13 = arith.shrui %11, %12 : vector<4x256xi32>
    %14 = arith.xori %11, %13 : vector<4x256xi32>
    %c2146121005_i32 = arith.constant 2146121005 : i32
    %15 = vector.broadcast %c2146121005_i32 : i32 to vector<4x256xi32>
    %16 = arith.muli %14, %15 : vector<4x256xi32>
    %c15_i32 = arith.constant 15 : i32
    %17 = vector.broadcast %c15_i32 : i32 to vector<4x256xi32>
    %18 = arith.shrui %16, %17 : vector<4x256xi32>
    %19 = arith.xori %16, %18 : vector<4x256xi32>
    %c-2073254261_i32 = arith.constant -2073254261 : i32
    %20 = vector.broadcast %c-2073254261_i32 : i32 to vector<4x256xi32>
    %21 = arith.muli %19, %20 : vector<4x256xi32>
    %c16_i32_0 = arith.constant 16 : i32
    %22 = vector.broadcast %c16_i32_0 : i32 to vector<4x256xi32>
    %23 = arith.shrui %21, %22 : vector<4x256xi32>
    %24 = arith.xori %21, %23 : vector<4x256xi32>
    %c1757159915_i32 = arith.constant 1757159915 : i32
    %25 = vector.broadcast %c1757159915_i32 : i32 to vector<4x256xi32>
    %26 = arith.addi %24, %25 : vector<4x256xi32>
    %c16_i32_1 = arith.constant 16 : i32
    %27 = vector.broadcast %c16_i32_1 : i32 to vector<4x256xi32>
    %28 = arith.shrui %26, %27 : vector<4x256xi32>
    %29 = arith.xori %26, %28 : vector<4x256xi32>
    %c2146121005_i32_2 = arith.constant 2146121005 : i32
    %30 = vector.broadcast %c2146121005_i32_2 : i32 to vector<4x256xi32>
    %31 = arith.muli %29, %30 : vector<4x256xi32>
    %c15_i32_3 = arith.constant 15 : i32
    %32 = vector.broadcast %c15_i32_3 : i32 to vector<4x256xi32>
    %33 = arith.shrui %31, %32 : vector<4x256xi32>
    %34 = arith.xori %31, %33 : vector<4x256xi32>
    %c-2073254261_i32_4 = arith.constant -2073254261 : i32
    %35 = vector.broadcast %c-2073254261_i32_4 : i32 to vector<4x256xi32>
    %36 = arith.muli %34, %35 : vector<4x256xi32>
    %c16_i32_5 = arith.constant 16 : i32
    %37 = vector.broadcast %c16_i32_5 : i32 to vector<4x256xi32>
    %38 = arith.shrui %36, %37 : vector<4x256xi32>
    %39 = arith.xori %36, %38 : vector<4x256xi32>
    %c8_i32 = arith.constant 8 : i32
    %40 = vector.broadcast %c8_i32 : i32 to vector<4x256xi32>
    %41 = arith.shrui %24, %40 : vector<4x256xi32>
    %42 = arith.sitofp %41 : vector<4x256xi32> to vector<4x256xf32>
    %cst = arith.constant 5.96046448E-8 : f32
    %43 = vector.broadcast %cst : f32 to vector<4x256xf32>
    %44 = arith.mulf %42, %43 : vector<4x256xf32>
    %c8_i32_6 = arith.constant 8 : i32
    %45 = vector.broadcast %c8_i32_6 : i32 to vector<4x256xi32>
    %46 = arith.shrui %39, %45 : vector<4x256xi32>
    %47 = arith.sitofp %46 : vector<4x256xi32> to vector<4x256xf32>
    %cst_7 = arith.constant 5.96046448E-8 : f32
    %48 = vector.broadcast %cst_7 : f32 to vector<4x256xf32>
    %49 = arith.mulf %47, %48 : vector<4x256xf32>
    %cst_8 = arith.constant 1.000000e+00 : f32
    %50 = vector.broadcast %cst_8 : f32 to vector<4x256xf32>
    %51 = arith.subf %50, %44 : vector<4x256xf32>
    %52 = math.log %51 : vector<4x256xf32>
    %cst_9 = arith.constant -2.000000e+00 : f32
    %53 = vector.broadcast %cst_9 : f32 to vector<4x256xf32>
    %54 = arith.mulf %53, %52 : vector<4x256xf32>
    %55 = math.sqrt %54 : vector<4x256xf32>
    %cst_10 = arith.constant 6.28318548 : f32
    %56 = vector.broadcast %cst_10 : f32 to vector<4x256xf32>
    %57 = arith.mulf %56, %49 : vector<4x256xf32>
    %58 = math.cos %57 : vector<4x256xf32>
    %59 = arith.mulf %55, %58 : vector<4x256xf32>
    %60 = math.sin %57 : vector<4x256xf32>
    %61 = arith.mulf %55, %60 : vector<4x256xf32>
    %62 = tpu.concatenate %59, %61 in 1 : vector<4x256xf32>, vector<4x256xf32> -> vector<4x512xf32>
    %c0_11 = arith.constant 0 : index
    %c0_12 = arith.constant 0 : index
    %63 = vector.load %arg2[%c0_11, %c0_12] : memref<4x512xf32, #tpu.memory_space<vmem>>, vector<4x512xf32>
    %cst_13 = arith.constant 1.000000e-01 : f32
    %64 = vector.broadcast %cst_13 : f32 to vector<4x512xf32>
    %65 = arith.mulf %64, %62 : vector<4x512xf32>
    %66 = arith.addf %63, %65 : vector<4x512xf32>
    %c0_14 = arith.constant 0 : index
    %c0_15 = arith.constant 0 : index
    %67 = vector.load %arg3[%c0_14, %c0_15] : memref<4x512xf32, #tpu.memory_space<vmem>>, vector<4x512xf32>
    tpu.vector_store %arg3[%c0_14, %c0_15], %66 {strides = array<i32>} : memref<4x512xf32, #tpu.memory_space<vmem>>, vector<4x512xf32>,
    return
  }
  func.func @transform_0(%arg0: i32, %arg1: memref<1xi32, #tpu.memory_space<smem>>) -> (i32, i32) {
    %c0_i32 = arith.constant 0 : i32
    %c0_i32_0 = arith.constant 0 : i32
    return %arg0, %c0_i32 : i32, i32
  }
  func.func @transform_1(%arg0: i32, %arg1: memref<1xi32, #tpu.memory_space<smem>>) -> (i32, i32) {
    %c0_i32 = arith.constant 0 : i32
    %c0_i32_0 = arith.constant 0 : i32
    return %arg0, %c0_i32 : i32, i32
  }
}

</mosaic_0001>

<llo_original>
// kernel: tpu_custom_call.1
$region0: #{tpu_custom_call.1}
  #allocation0 [shape = 'u32[]', space=smem, size = 0x4, offset = 0x4, fixed_abs, tag = 'smem constant byte address 0x4 - core index']
  #allocation1 [shape = 'u32[144,128]{1,0:T(1,128)}', space=vmem, size = 0x12000, scoped, tag = 'internal scratch']
  #allocation2 [shape = 's32[1]{0}', space=sflag, size = 0x4, scoped, tag = 'scoped memory for tpu_custom_call.1']
  #allocation3 [shape = 's32[1]{0:T(128)S(6)}', space=smem, size = 0x200, scoped, tag = 'prefetched SMEM operand 0']
  %s0 = inlined_call_operand.<no memory space> [shape: s32[1], index: 0, kind: input, shape index: {}]
  %s1 = inlined_call_operand.hbm [shape: f32[4,512], index: 1, kind: input, shape index: {}]
  %s2 = inlined_call_operand.hbm [shape: f32[4,512], index: 2, kind: output, shape index: {}]
  %s3 = sld [smem:[#allocation0]]
  $region18: #{tpu_custom_call.1} parent=0
    _
  %s5 = ssub.s32 1, %s3
  %s6 = scalar_select 0, %s5, %s3
  %7 = sst [smem:[#allocation3]] %s0
  $region1: #{tpu_custom_call.1} parent=0
    #allocation4 [shape = 'u8[8192]{0}', space=vmem, size = 0x2000, scoped, tag = 'input window, operand 1, single buffered']
    #allocation5 [shape = 's32[1]{0}', space=sflag, size = 0x4, scoped, tag = 'scoped memory for tpu_custom_call.1']
    #allocation6 [shape = 's32[1]{0}', space=sflag, size = 0x4, scoped, tag = 'scoped memory for tpu_custom_call.1']
    #allocation7 [shape = 'u8[8192]{0}', space=vmem, size = 0x2000, scoped, tag = 'output window, operand 0, single buffered']
    %8 = vsyncpa [#allocation5], 0
    %9 = vsyncpa [#allocation6], 0
    // Predicated region
    $region2: #{tpu_custom_call.1} parent=1 // pred_check
      _
    $region3: #{tpu_custom_call.1} parent=1 // pred_check_branch
      %11 = sbr.rel (0) target = $region5
    $region4: #{tpu_custom_call.1} parent=1 // pred_region
      %s13 = ssub.s32 256, 256
      %14 = vsyncadd [#allocation5], %s13
      %s16 = sshll.u32 [#allocation4], 4
      %s17 = int_to_ptr.vmem [resolvable:$true] %s16
      %19 = dma.hbm_to_vmem [thread:$0]  %s1, 256, %s17, [#allocation5]
    $region5: #{tpu_custom_call.1} parent=1 // pred_fallthru
      _
    // Predicated region
    $region6: #{tpu_custom_call.1} parent=1 // pred_check
      _
    $region7: #{tpu_custom_call.1} parent=1 // pred_check_branch
      %21 = sbr.rel (0) target = $region9
    $region8: #{tpu_custom_call.1} parent=1 // pred_region
      %22 = dma.done [#allocation5], 256
    $region9: #{tpu_custom_call.1} parent=1 // pred_fallthru
      _
    %v23 = vlaneseq
    %v24 = vshrl.u32 %v23, 7
    %v25 = vlaneseq
    %v26 = vand.u32 %v25, 127
    %v27 = vadd.s32 %v26, 128
    %s28 = smul.u32 0, 1024
    %v29 = vmul.u32 %v24, 256
    %v30 = vstv %s28
    %v31 = vadd.s32 %v30, %v29
    %v32 = vadd.s32 %v31, %v26
    %v33 = vadd.s32 %v31, %v27
    %s34 = sld [smem:[#allocation3]]
    %s35 = smul.u32 %s34, 2654435769
    %v36 = vstv %s35
    %v37 = vxor.u32 %v32, %v36
    %v38 = vxor.u32 %v33, %v36
    %v39 = vshrl.u32 %v37, 16
    %v40 = vshrl.u32 %v38, 16
    %v41 = vxor.u32 %v37, %v39
    %v42 = vxor.u32 %v38, %v40
    %v43 = vmul.u32 %v41, 2146121005
    %v44 = vmul.u32 %v42, 2146121005
    %v45 = vshrl.u32 %v43, 15
    %v46 = vshrl.u32 %v44, 15
    %v47 = vxor.u32 %v43, %v45
    %v48 = vxor.u32 %v44, %v46
    %v49 = vmul.u32 %v47, 2221713035
    %v50 = vmul.u32 %v48, 2221713035
    %v51 = vshrl.u32 %v49, 16
    %v52 = vshrl.u32 %v50, 16
    %v53 = vxor.u32 %v49, %v51
    %v54 = vxor.u32 %v50, %v52
    %v55 = vadd.s32 %v53, 1757159915
    %v56 = vadd.s32 %v54, 1757159915
    %v57 = vshrl.u32 %v55, 16
    %v58 = vshrl.u32 %v56, 16
    %v59 = vxor.u32 %v55, %v57
    %v60 = vxor.u32 %v56, %v58
    %v61 = vmul.u32 %v59, 2146121005
    %v62 = vmul.u32 %v60, 2146121005
    %v63 = vshrl.u32 %v61, 15
    %v64 = vshrl.u32 %v62, 15
    %v65 = vxor.u32 %v61, %v63
    %v66 = vxor.u32 %v62, %v64
    %v67 = vmul.u32 %v65, 2221713035
    %v68 = vmul.u32 %v66, 2221713035
    %v69 = vshrl.u32 %v67, 16
    %v70 = vshrl.u32 %v68, 16
    %v71 = vxor.u32 %v67, %v69
    %v72 = vxor.u32 %v68, %v70
    %v73 = vshrl.u32 %v53, 8
    %v74 = vshrl.u32 %v54, 8
    %v75 = vcvt.s32.f32 %v73
    %v76 = vcvt.s32.f32 %v74
    %v77 = vmul.f32 %v75, 5.9604645e-08
    %v78 = vmul.f32 %v76, 5.9604645e-08
    %v79 = vshrl.u32 %v71, 8
    %v80 = vshrl.u32 %v72, 8
    %v81 = vcvt.s32.f32 %v79
    %v82 = vcvt.s32.f32 %v80
    %v83 = vmul.f32 %v81, 5.9604645e-08
    %v84 = vmul.f32 %v82, 5.9604645e-08
    %v85 = vsub.f32 1.0, %v77
    %v86 = vsub.f32 1.0, %v78
    %v87 = vlog2.pop %v85
    %v88 = vmul.f32 %v87, 0.6931472
    %v89 = vlog2.pop %v86
    %v90 = vmul.f32 %v89, 0.6931472
    %v91 = vmul.f32 %v88, -2.0
    %v92 = vmul.f32 %v90, -2.0
    %v93 = vrsqrt.pop %v91
    %v94 = vmul.f32 %v91, %v93
    %vm95 = vcmp.eq.f32.partialorder %v91, inf
    %v96 = vsel %vm95, %v91, %v94
    %vm97 = vcmp.eq.f32.partialorder %v91, 0.0
    %v98 = vand.u32 %v91, 2147483648
    %v99 = vsel %vm97, %v98, %v96
    %v100 = vrsqrt.pop %v92
    %v101 = vmul.f32 %v92, %v100
    %vm102 = vcmp.eq.f32.partialorder %v92, inf
    %v103 = vsel %vm102, %v92, %v101
    %vm104 = vcmp.eq.f32.partialorder %v92, 0.0
    %v105 = vand.u32 %v92, 2147483648
    %v106 = vsel %vm104, %v105, %v103
    %v107 = vmul.f32 %v83, 6.2831855
    %v108 = vmul.f32 %v84, 6.2831855
    %v109 = vand.u32 2147483647, %v107
    %vm110 = vcmp.le.f32.partialorder %v109, 0.7853982
    %vm111 = vcmp.lt.s32.totalorder %v107, 0
    %v112 = vand.u32 %v107, 2139095040
    %v113 = vshrl.u32 %v112, 23
    %v114 = vsub.s32 %v113, 127
    %v115 = vand.u32 2147483647, %v107
    %v116 = vand.u32 %v115, 8388607
    %v117 = vor.u32 %v116, 8388608
    %v118 = vsub.s32 0, %v117
    %v119 = vadd.s32 %v114, 1
    %vm120 = vcmp.gt.s32.totalorder %v119, 0
    %v121 = vsel %vm120, %v119, 0
    %v122 = vshrl.u32 %v121, 5
    %v123 = vand.u32 %v121, 31
    %v124 = vsub.s32 32, %v123
    %v125 = vshrl.u32 683565275, %v124
    %v126 = vshll.u32 683565275, %v123
    %v127 = vshrl.u32 2475754826, %v124
    %v128 = vor.u32 %v126, %v127
    %v129 = vshll.u32 2475754826, %v123
    %v130 = vshrl.u32 2131351028, %v124
    %v131 = vor.u32 %v129, %v130
    %v132 = vshll.u32 2131351028, %v123
    %v133 = vshrl.u32 2102212464, %v124
    %v134 = vor.u32 %v132, %v133
    %v135 = vshll.u32 2102212464, %v123
    %v136 = vshrl.u32 920167782, %v124
    %v137 = vor.u32 %v135, %v136
    %v138 = vshll.u32 920167782, %v123
    %v139 = vshrl.u32 1326507024, %v124
    %v140 = vor.u32 %v138, %v139
    %vm141 = vcmp.lt.s32.totalorder %v122, 1
    %vm142 = vcmp.lt.s32.totalorder %v122, 2
    %vm143 = vcmp.lt.s32.totalorder %v122, 3
    %vm144 = vcmp.lt.s32.totalorder %v122, 4
    %v145 = vsel %vm141, %v125, %v128
    %v146 = vsel %vm144, %v134, 2102212464
    %v147 = vsel %vm143, %v131, %v146
    %v148 = vsel %vm142, %v145, %v147
    %v149 = vsel %vm141, %v128, %v131
    %v150 = vsel %vm144, %v137, 920167782
    %v151 = vsel %vm143, %v134, %v150
    %v152 = vsel %vm142, %v149, %v151
    %v153 = vsel %vm141, %v131, %v134
    %v154 = vsel %vm144, %v140, 1326507024
    %v155 = vsel %vm143, %v137, %v154
    %v156 = vsel %vm142, %v153, %v155
    %v157 = vshll.u32 %v117, 8
    %v158 = vmul.u32.u64.compose %v157, %v156
    %v159 = vextract.low.u32 %v158
    %v160 = vextract.high.u32 %v158
    %v161 = vmul.u32.u64.compose %v157, %v152
    %v162 = vextract.low.u32 %v161
    %v163 = vextract.high.u32 %v161
    %v164 = vmul.u32 %v157, %v148
    %v165 = vadd.s32 %v160, %v162
    %vm166 = vc.u32 %v160, %v162
    %v167 = vadd.s32 %v163, 1
    %v168 = vsel %vm166, %v167, %v163
    %v169 = vadd.s32 %v164, %v168
    %v170 = vadd.s32 %v169, 536870912
    %v171 = vshrl.u32 %v170, 30
    %v172 = vshll.u32 %v171, 30
    %v173 = vsub.s32 %v169, %v172
    %vm174 = vcmp.lt.s32.totalorder %v173, 0
    %v175 = vsub.s32 0, %v173
    %v176 = vsel %vm174, %v175, %v173
    %v177 = vclz %v176
    %v178 = vsub.s32 %v177, 2
    %vm179 = vcmp.gt.s32.totalorder 0, %v178
    %v180 = vsel %vm179, 0, %v178
    %v181 = vsub.s32 32, %v180
    %v182 = vshll.u32 %v173, %v180
    %v183 = vshrl.u32 %v165, %v181
    %v184 = vor.u32 %v182, %v183
    %v185 = vsub.s32 4294967266, %v180
    %v186 = vadd.s32 %v185, 127
    %v187 = vshll.u32 %v186, 23
    %v188 = vor.u32 4788187, %v187
    %v189 = vand.u32 2147483647, %v188
    %v191 = vcvt.s32.f32 %v184
    %v192 = vmul.f32 %v191, %v189
    %v193 = vxor.u32 %v192, 2147483648
    %v194 = vsel %vm111, %v193, %v192
    %v195 = vsub.s32 4, %v171
    %v196 = vsel %vm111, %v195, %v171
    %v197 = vsel %vm110, %v107, %v194
    %v198 = vsel %vm110, 0, %v196
    %v199 = vcosq.f32.pop %v197
    %v200 = vsinq.f32.pop %v197
    %vm201 = vweird.f32 %v107
    %v202 = vand.u32 %v198, 3
    %vm203 = vcmp.lt.s32.totalorder %v202, 2
    %vm204 = vcmp.eq.s32.totalorder %v202, 0
    %v205 = vxor.u32 %v200, 2147483648
    %v206 = vsel %vm204, %v199, %v205
    %vm207 = vcmp.eq.s32.totalorder %v202, 2
    %v208 = vxor.u32 %v199, 2147483648
    %v209 = vsel %vm207, %v208, %v200
    %v210 = vsel %vm203, %v206, %v209
    %v211 = vsel %vm201, nan, %v210
    %v212 = vand.u32 2147483647, %v108
    %vm213 = vcmp.le.f32.partialorder %v212, 0.7853982
    %vm214 = vcmp.lt.s32.totalorder %v108, 0
    %v215 = vand.u32 %v108, 2139095040
    %v216 = vshrl.u32 %v215, 23
    %v217 = vsub.s32 %v216, 127
    %v218 = vand.u32 2147483647, %v108
    %v219 = vand.u32 %v218, 8388607
    %v220 = vor.u32 %v219, 8388608
    %v221 = vsub.s32 0, %v220
    %v222 = vadd.s32 %v217, 1
    %vm223 = vcmp.gt.s32.totalorder %v222, 0
    %v224 = vsel %vm223, %v222, 0
    %v225 = vshrl.u32 %v224, 5
    %v226 = vand.u32 %v224, 31
    %v227 = vsub.s32 32, %v226
    %v228 = vshrl.u32 683565275, %v227
    %v229 = vshll.u32 683565275, %v226
    %v230 = vshrl.u32 2475754826, %v227
    %v231 = vor.u32 %v229, %v230
    %v232 = vshll.u32 2475754826, %v226
    %v233 = vshrl.u32 2131351028, %v227
    %v234 = vor.u32 %v232, %v233
    %v235 = vshll.u32 2131351028, %v226
    %v236 = vshrl.u32 2102212464, %v227
    %v237 = vor.u32 %v235, %v236
    %v238 = vshll.u32 2102212464, %v226
    %v239 = vshrl.u32 920167782, %v227
    %v240 = vor.u32 %v238, %v239
    %v241 = vshll.u32 920167782, %v226
    %v242 = vshrl.u32 1326507024, %v227
    %v243 = vor.u32 %v241, %v242
    %vm244 = vcmp.lt.s32.totalorder %v225, 1
    %vm245 = vcmp.lt.s32.totalorder %v225, 2
    %vm246 = vcmp.lt.s32.totalorder %v225, 3
    %vm247 = vcmp.lt.s32.totalorder %v225, 4
    %v248 = vsel %vm244, %v228, %v231
    %v249 = vsel %vm247, %v237, 2102212464
    %v250 = vsel %vm246, %v234, %v249
    %v251 = vsel %vm245, %v248, %v250
    %v252 = vsel %vm244, %v231, %v234
    %v253 = vsel %vm247, %v240, 920167782
    %v254 = vsel %vm246, %v237, %v253
    %v255 = vsel %vm245, %v252, %v254
    %v256 = vsel %vm244, %v234, %v237
    %v257 = vsel %vm247, %v243, 1326507024
    %v258 = vsel %vm246, %v240, %v257
    %v259 = vsel %vm245, %v256, %v258
    %v260 = vshll.u32 %v220, 8
    %v261 = vmul.u32.u64.compose %v260, %v259
    %v262 = vextract.low.u32 %v261
    %v263 = vextract.high.u32 %v261
    %v264 = vmul.u32.u64.compose %v260, %v255
    %v265 = vextract.low.u32 %v264
    %v266 = vextract.high.u32 %v264
    %v267 = vmul.u32 %v260, %v251
    %v268 = vadd.s32 %v263, %v265
    %vm269 = vc.u32 %v263, %v265
    %v270 = vadd.s32 %v266, 1
    %v271 = vsel %vm269, %v270, %v266
    %v272 = vadd.s32 %v267, %v271
    %v273 = vadd.s32 %v272, 536870912
    %v274 = vshrl.u32 %v273, 30
    %v275 = vshll.u32 %v274, 30
    %v276 = vsub.s32 %v272, %v275
    %vm277 = vcmp.lt.s32.totalorder %v276, 0
    %v278 = vsub.s32 0, %v276
    %v279 = vsel %vm277, %v278, %v276
    %v280 = vclz %v279
    %v281 = vsub.s32 %v280, 2
    %vm282 = vcmp.gt.s32.totalorder 0, %v281
    %v283 = vsel %vm282, 0, %v281
    %v284 = vsub.s32 32, %v283
    %v285 = vshll.u32 %v276, %v283
    %v286 = vshrl.u32 %v268, %v284
    %v287 = vor.u32 %v285, %v286
    %v288 = vsub.s32 4294967266, %v283
    %v289 = vadd.s32 %v288, 127
    %v290 = vshll.u32 %v289, 23
    %v291 = vor.u32 4788187, %v290
    %v292 = vand.u32 2147483647, %v291
    %v294 = vcvt.s32.f32 %v287
    %v295 = vmul.f32 %v294, %v292
    %v296 = vxor.u32 %v295, 2147483648
    %v297 = vsel %vm214, %v296, %v295
    %v298 = vsub.s32 4, %v274
    %v299 = vsel %vm214, %v298, %v274
    %v300 = vsel %vm213, %v108, %v297
    %v301 = vsel %vm213, 0, %v299
    %v302 = vcosq.f32.pop %v300
    %v303 = vsinq.f32.pop %v300
    %vm304 = vweird.f32 %v108
    %v305 = vand.u32 %v301, 3
    %vm306 = vcmp.lt.s32.totalorder %v305, 2
    %vm307 = vcmp.eq.s32.totalorder %v305, 0
    %v308 = vxor.u32 %v303, 2147483648
    %v309 = vsel %vm307, %v302, %v308
    %vm310 = vcmp.eq.s32.totalorder %v305, 2
    %v311 = vxor.u32 %v302, 2147483648
    %v312 = vsel %vm310, %v311, %v303
    %v313 = vsel %vm306, %v309, %v312
    %v314 = vsel %vm304, nan, %v313
    %v315 = vmul.f32 %v99, %v211
    %v316 = vmul.f32 %v106, %v314
    %v317 = vand.u32 2147483647, %v107
    %vm318 = vcmp.le.f32.partialorder %v317, 0.7853982
    %vm319 = vcmp.lt.s32.totalorder %v107, 0
    %v320 = vand.u32 %v107, 2139095040
    %v321 = vshrl.u32 %v320, 23
    %v322 = vsub.s32 %v321, 127
    %v323 = vand.u32 2147483647, %v107
    %v324 = vand.u32 %v323, 8388607
    %v325 = vor.u32 %v324, 8388608
    %v326 = vsub.s32 0, %v325
    %v327 = vadd.s32 %v322, 1
    %vm328 = vcmp.gt.s32.totalorder %v327, 0
    %v329 = vsel %vm328, %v327, 0
    %v330 = vshrl.u32 %v329, 5
    %v331 = vand.u32 %v329, 31
    %v332 = vsub.s32 32, %v331
    %v333 = vshrl.u32 683565275, %v332
    %v334 = vshll.u32 683565275, %v331
    %v335 = vshrl.u32 2475754826, %v332
    %v336 = vor.u32 %v334, %v335
    %v337 = vshll.u32 2475754826, %v331
    %v338 = vshrl.u32 2131351028, %v332
    %v339 = vor.u32 %v337, %v338
    %v340 = vshll.u32 2131351028, %v331
    %v341 = vshrl.u32 2102212464, %v332
    %v342 = vor.u32 %v340, %v341
    %v343 = vshll.u32 2102212464, %v331
    %v344 = vshrl.u32 920167782, %v332
    %v345 = vor.u32 %v343, %v344
    %v346 = vshll.u32 920167782, %v331
    %v347 = vshrl.u32 1326507024, %v332
    %v348 = vor.u32 %v346, %v347
    %vm349 = vcmp.lt.s32.totalorder %v330, 1
    %vm350 = vcmp.lt.s32.totalorder %v330, 2
    %vm351 = vcmp.lt.s32.totalorder %v330, 3
    %vm352 = vcmp.lt.s32.totalorder %v330, 4
    %v353 = vsel %vm349, %v333, %v336
    %v354 = vsel %vm352, %v342, 2102212464
    %v355 = vsel %vm351, %v339, %v354
    %v356 = vsel %vm350, %v353, %v355
    %v357 = vsel %vm349, %v336, %v339
    %v358 = vsel %vm352, %v345, 920167782
    %v359 = vsel %vm351, %v342, %v358
    %v360 = vsel %vm350, %v357, %v359
    %v361 = vsel %vm349, %v339, %v342
    %v362 = vsel %vm352, %v348, 1326507024
    %v363 = vsel %vm351, %v345, %v362
    %v364 = vsel %vm350, %v361, %v363
    %v365 = vshll.u32 %v325, 8
    %v366 = vmul.u32.u64.compose %v365, %v364
    %v367 = vextract.low.u32 %v366
    %v368 = vextract.high.u32 %v366
    %v369 = vmul.u32.u64.compose %v365, %v360
    %v370 = vextract.low.u32 %v369
    %v371 = vextract.high.u32 %v369
    %v372 = vmul.u32 %v365, %v356
    %v373 = vadd.s32 %v368, %v370
    %vm374 = vc.u32 %v368, %v370
    %v375 = vadd.s32 %v371, 1
    %v376 = vsel %vm374, %v375, %v371
    %v377 = vadd.s32 %v372, %v376
    %v378 = vadd.s32 %v377, 536870912
    %v379 = vshrl.u32 %v378, 30
    %v380 = vshll.u32 %v379, 30
    %v381 = vsub.s32 %v377, %v380
    %vm382 = vcmp.lt.s32.totalorder %v381, 0
    %v383 = vsub.s32 0, %v381
    %v384 = vsel %vm382, %v383, %v381
    %v385 = vclz %v384
    %v386 = vsub.s32 %v385, 2
    %vm387 = vcmp.gt.s32.totalorder 0, %v386
    %v388 = vsel %vm387, 0, %v386
    %v389 = vsub.s32 32, %v388
    %v390 = vshll.u32 %v381, %v388
    %v391 = vshrl.u32 %v373, %v389
    %v392 = vor.u32 %v390, %v391
    %v393 = vsub.s32 4294967266, %v388
    %v394 = vadd.s32 %v393, 127
    %v395 = vshll.u32 %v394, 23
    %v396 = vor.u32 4788187, %v395
    %v397 = vand.u32 2147483647, %v396
    %v399 = vcvt.s32.f32 %v392
    %v400 = vmul.f32 %v399, %v397
    %v401 = vxor.u32 %v400, 2147483648
    %v402 = vsel %vm319, %v401, %v400
    %v403 = vsub.s32 4, %v379
    %v404 = vsel %vm319, %v403, %v379
    %v405 = vsel %vm318, %v107, %v402
    %v406 = vsel %vm318, 0, %v404
    %v407 = vcosq.f32.pop %v405
    %v408 = vsinq.f32.pop %v405
    %vm409 = vweird.f32 %v107
    %v410 = vadd.s32 %v406, 3
    %v411 = vand.u32 %v410, 3
    %vm412 = vcmp.lt.s32.totalorder %v411, 2
    %vm413 = vcmp.eq.s32.totalorder %v411, 0
    %v414 = vxor.u32 %v408, 2147483648
    %v415 = vsel %vm413, %v407, %v414
    %vm416 = vcmp.eq.s32.totalorder %v411, 2
    %v417 = vxor.u32 %v407, 2147483648
    %v418 = vsel %vm416, %v417, %v408
    %v419 = vsel %vm412, %v415, %v418
    %v420 = vsel %vm409, nan, %v419
    %v421 = vand.u32 2147483647, %v108
    %vm422 = vcmp.le.f32.partialorder %v421, 0.7853982
    %vm423 = vcmp.lt.s32.totalorder %v108, 0
    %v424 = vand.u32 %v108, 2139095040
    %v425 = vshrl.u32 %v424, 23
    %v426 = vsub.s32 %v425, 127
    %v427 = vand.u32 2147483647, %v108
    %v428 = vand.u32 %v427, 8388607
    %v429 = vor.u32 %v428, 8388608
    %v430 = vsub.s32 0, %v429
    %v431 = vadd.s32 %v426, 1
    %vm432 = vcmp.gt.s32.totalorder %v431, 0
    %v433 = vsel %vm432, %v431, 0
    %v434 = vshrl.u32 %v433, 5
    %v435 = vand.u32 %v433, 31
    %v436 = vsub.s32 32, %v435
    %v437 = vshrl.u32 683565275, %v436
    %v438 = vshll.u32 683565275, %v435
    %v439 = vshrl.u32 2475754826, %v436
    %v440 = vor.u32 %v438, %v439
    %v441 = vshll.u32 2475754826, %v435
    %v442 = vshrl.u32 2131351028, %v436
    %v443 = vor.u32 %v441, %v442
    %v444 = vshll.u32 2131351028, %v435
    %v445 = vshrl.u32 2102212464, %v436
    %v446 = vor.u32 %v444, %v445
    %v447 = vshll.u32 2102212464, %v435
    %v448 = vshrl.u32 920167782, %v436
    %v449 = vor.u32 %v447, %v448
    %v450 = vshll.u32 920167782, %v435
    %v451 = vshrl.u32 1326507024, %v436
    %v452 = vor.u32 %v450, %v451
    %vm453 = vcmp.lt.s32.totalorder %v434, 1
    %vm454 = vcmp.lt.s32.totalorder %v434, 2
    %vm455 = vcmp.lt.s32.totalorder %v434, 3
    %vm456 = vcmp.lt.s32.totalorder %v434, 4
    %v457 = vsel %vm453, %v437, %v440
    %v458 = vsel %vm456, %v446, 2102212464
    %v459 = vsel %vm455, %v443, %v458
    %v460 = vsel %vm454, %v457, %v459
    %v461 = vsel %vm453, %v440, %v443
    %v462 = vsel %vm456, %v449, 920167782
    %v463 = vsel %vm455, %v446, %v462
    %v464 = vsel %vm454, %v461, %v463
    %v465 = vsel %vm453, %v443, %v446
    %v466 = vsel %vm456, %v452, 1326507024
    %v467 = vsel %vm455, %v449, %v466
    %v468 = vsel %vm454, %v465, %v467
    %v469 = vshll.u32 %v429, 8
    %v470 = vmul.u32.u64.compose %v469, %v468
    %v471 = vextract.low.u32 %v470
    %v472 = vextract.high.u32 %v470
    %v473 = vmul.u32.u64.compose %v469, %v464
    %v474 = vextract.low.u32 %v473
    %v475 = vextract.high.u32 %v473
    %v476 = vmul.u32 %v469, %v460
    %v477 = vadd.s32 %v472, %v474
    %vm478 = vc.u32 %v472, %v474
    %v479 = vadd.s32 %v475, 1
    %v480 = vsel %vm478, %v479, %v475
    %v481 = vadd.s32 %v476, %v480
    %v482 = vadd.s32 %v481, 536870912
    %v483 = vshrl.u32 %v482, 30
    %v484 = vshll.u32 %v483, 30
    %v485 = vsub.s32 %v481, %v484
    %vm486 = vcmp.lt.s32.totalorder %v485, 0
    %v487 = vsub.s32 0, %v485
    %v488 = vsel %vm486, %v487, %v485
    %v489 = vclz %v488
    %v490 = vsub.s32 %v489, 2
    %vm491 = vcmp.gt.s32.totalorder 0, %v490
    %v492 = vsel %vm491, 0, %v490
    %v493 = vsub.s32 32, %v492
    %v494 = vshll.u32 %v485, %v492
    %v495 = vshrl.u32 %v477, %v493
    %v496 = vor.u32 %v494, %v495
    %v497 = vsub.s32 4294967266, %v492
    %v498 = vadd.s32 %v497, 127
    %v499 = vshll.u32 %v498, 23
    %v500 = vor.u32 4788187, %v499
    %v501 = vand.u32 2147483647, %v500
    %v503 = vcvt.s32.f32 %v496
    %v504 = vmul.f32 %v503, %v501
    %v505 = vxor.u32 %v504, 2147483648
    %v506 = vsel %vm423, %v505, %v504
    %v507 = vsub.s32 4, %v483
    %v508 = vsel %vm423, %v507, %v483
    %v509 = vsel %vm422, %v108, %v506
    %v510 = vsel %vm422, 0, %v508
    %v511 = vcosq.f32.pop %v509
    %v512 = vsinq.f32.pop %v509
    %vm513 = vweird.f32 %v108
    %v514 = vadd.s32 %v510, 3
    %v515 = vand.u32 %v514, 3
    %vm516 = vcmp.lt.s32.totalorder %v515, 2
    %vm517 = vcmp.eq.s32.totalorder %v515, 0
    %v518 = vxor.u32 %v512, 2147483648
    %v519 = vsel %vm517, %v511, %v518
    %vm520 = vcmp.eq.s32.totalorder %v515, 2
    %v521 = vxor.u32 %v511, 2147483648
    %v522 = vsel %vm520, %v521, %v512
    %v523 = vsel %vm516, %v519, %v522
    %v524 = vsel %vm513, nan, %v523
    %v525 = vmul.f32 %v99, %v420
    %v526 = vmul.f32 %v106, %v524
    %v527 = vld [vmem:[#allocation4] sm:$0xff]
    %v528 = vld [vmem:[#allocation4 + $0x8] sm:$0xff]
    %v529 = vmul.f32 %v315, 0.1
    %v530 = vmul.f32 %v316, 0.1
    %v531 = vmul.f32 %v525, 0.1
    %v532 = vmul.f32 %v526, 0.1
    %v537 = vcombine.low %v529, %v530
    %v538 = vcombine.low %v531, %v532
    %v541 = vadd.f32 %v527, %v537
    %v542 = vadd.f32 %v528, %v538
    %543 = vst [vmem:[#allocation7] sm:$0xff] %v541
    %544 = vst [vmem:[#allocation7 + $0x8] sm:$0xff] %v542
    // Predicated region
    $region10: #{tpu_custom_call.1} parent=1 // pred_check
      _
    $region11: #{tpu_custom_call.1} parent=1 // pred_check_branch
      %546 = sbr.rel (0) target = $region13
    $region12: #{tpu_custom_call.1} parent=1 // pred_region
      %s548 = ssub.s32 256, 256
      %549 = vsyncadd [#allocation6], %s548
      %s551 = sshll.u32 [#allocation7], 4
      %s552 = int_to_ptr.vmem [resolvable:$true] %s551
      %554 = dma.vmem_to_hbm [thread:$0]  %s552, 256, %s2, [#allocation6]
    $region13: #{tpu_custom_call.1} parent=1 // pred_fallthru
      _
    // Predicated region
    $region14: #{tpu_custom_call.1} parent=1 // pred_check
      _
    $region15: #{tpu_custom_call.1} parent=1 // pred_check_branch
      %556 = sbr.rel (0) target = $region17
    $region16: #{tpu_custom_call.1} parent=1 // pred_region
      %557 = dma.done [#allocation6], 256
    $region17: #{tpu_custom_call.1} parent=1 // pred_fallthru
      _
    %558 = vsyncpa [#allocation5], 1
    %559 = vsyncpa [#allocation6], 1

</llo_original>
